<compile_context>
chip_gen: v7x
topology: tpu7x:2x2x1
jax: 0.10.0
libtpu: 0.0.40
codegen_flags: <defaults>
</compile_context>

<pallas_src>
import jax
import jax.numpy as jnp
from jax.experimental import pallas as pl
from jax.experimental.pallas import tpu as pltpu

CNN_OUTPUT_DEPTH = 15
IN_FEATURES = 27 * CNN_OUTPUT_DEPTH   # 405
MID_FEATURES = 25
HIDDEN_SIZE = 10
EPS = 1e-5

MID_PAD = 128                 # hidden 25 -> 128 (lane-aligned intermediate, VMEM only)
MAX_ROW_BLOCK = 2048          # rows per grid step at large batch
VMEM_LIMIT_BYTES = 32 * 1024 * 1024


def _fused_mlp_kernel(x_ref, w1_ref, b1_ref, w2_ref, b2_ref, o_ref):
    # Linear(405 -> 25, BN folded in) + ReLU (hidden lane-padded to 128 in VMEM).
    h = jnp.dot(x_ref[...], w1_ref[...], preferred_element_type=jnp.float32)
    h = jnp.maximum(h + b1_ref[...], 0.0)
    # Linear(25 -> 10), stored directly at the real output width.
    o_ref[...] = (
        jnp.dot(h, w2_ref[...], preferred_element_type=jnp.float32) + b2_ref[...]
    )


def _pad_to(x, shape):
    pads = [(0, t - s) for s, t in zip(x.shape, shape)]
    return jnp.pad(x, pads)


def _pick_row_block(n):
    # Large batches: 2048-row tiles (~11 MiB VMEM incl. double buffers with the
    # 405-wide activation laid out as 512 lanes) amortize per-step overhead.
    if n >= 4 * MAX_ROW_BLOCK:
        return MAX_ROW_BLOCK
    if n <= 256:
        return n  # single (or full) block; block == full dim is always legal
    # Mid-size: aim for >= 4 grid steps (8-row aligned) so the "parallel" axis
    # can feed both v7x TensorCores while still pipelining.
    rb = -(-n // 4)
    rb = -(-rb // 8) * 8
    return min(rb, MAX_ROW_BLOCK)


def encoded_image_to_hidden(x, params):
    """x: any shape whose trailing dims flatten to 405 per row (e.g. (B,15,3,3,3)).
    Accepts f32 or bf16 input; no host-side dtype-conversion pass is emitted."""
    x2d = jnp.reshape(x, (-1, IN_FEATURES))
    n = x2d.shape[0]

    # Fold eval-mode BatchNorm into the first Linear (exact, parameter-sized work).
    scale = params["gamma"] * jax.lax.rsqrt(params["running_var"] + EPS)
    w1_f = params["w1"] * scale[None, :]
    b1_f = (params["b1"] - params["running_mean"]) * scale + params["beta"]

    # Pad only the small parameter tensors (zero padding keeps padded hidden
    # lanes exactly zero, so the narrow output is exact).
    w1_p = _pad_to(w1_f, (IN_FEATURES, MID_PAD))                    # (405, 128)
    b1_p = _pad_to(b1_f.reshape(1, -1), (1, MID_PAD))               # (1, 128)
    w2_p = _pad_to(params["w2"], (MID_PAD, HIDDEN_SIZE))            # (128, 10)
    b2_p = params["b2"].reshape(1, HIDDEN_SIZE)                     # (1, 10)

    row_block = _pick_row_block(n)
    grid = (pl.cdiv(n, row_block),)

    in_bytes = IN_FEATURES * x2d.dtype.itemsize
    cost = pl.CostEstimate(
        flops=2 * n * (IN_FEATURES * MID_FEATURES + MID_FEATURES * HIDDEN_SIZE),
        transcendentals=0,
        bytes_accessed=n * (in_bytes + HIDDEN_SIZE * 4)
        + 4 * (w1_p.size + b1_p.size + w2_p.size + b2_p.size),
    )

    out = pl.pallas_call(
        _fused_mlp_kernel,
        out_shape=jax.ShapeDtypeStruct((n, HIDDEN_SIZE), jnp.float32),
        grid=grid,
        in_specs=[
            pl.BlockSpec((row_block, IN_FEATURES), lambda i: (i, 0)),   # activations
            pl.BlockSpec((IN_FEATURES, MID_PAD), lambda i: (0, 0)),     # resident w1
            pl.BlockSpec((1, MID_PAD), lambda i: (0, 0)),               # resident b1
            pl.BlockSpec((MID_PAD, HIDDEN_SIZE), lambda i: (0, 0)),     # resident w2
            pl.BlockSpec((1, HIDDEN_SIZE), lambda i: (0, 0)),           # resident b2
        ],
        out_specs=pl.BlockSpec((row_block, HIDDEN_SIZE), lambda i: (i, 0)),
        compiler_params=pltpu.CompilerParams(
            dimension_semantics=("parallel",),
            vmem_limit_bytes=VMEM_LIMIT_BYTES,
        ),
        cost_estimate=cost,
    )(x2d, w1_p, b1_p, w2_p, b2_p)

    return out


def init_params(key):
    """Deterministic parameter init mirroring the module's shapes.
    PyTorch Linear weight is (out, in); we store the transposed (in, out)."""
    k1, k2, k3, k4, k5, k6, k7, k8 = jax.random.split(key, 8)
    bound1 = 1.0 / jnp.sqrt(IN_FEATURES)
    bound2 = 1.0 / jnp.sqrt(MID_FEATURES)
    return {
        "w1": jax.random.uniform(k1, (IN_FEATURES, MID_FEATURES), jnp.float32,
                                 -bound1, bound1),
        "b1": jax.random.uniform(k2, (MID_FEATURES,), jnp.float32, -bound1, bound1),
        "gamma": jax.random.uniform(k3, (MID_FEATURES,), jnp.float32, 0.5, 1.5),
        "beta": jax.random.uniform(k4, (MID_FEATURES,), jnp.float32, -0.5, 0.5),
        "running_mean": jax.random.uniform(k5, (MID_FEATURES,), jnp.float32, -0.5, 0.5),
        "running_var": jax.random.uniform(k6, (MID_FEATURES,), jnp.float32, 0.5, 1.5),
        "w2": jax.random.uniform(k7, (MID_FEATURES, HIDDEN_SIZE), jnp.float32,
                                 -bound2, bound2),
        "b2": jax.random.uniform(k8, (HIDDEN_SIZE,), jnp.float32, -bound2, bound2),
    }


def reference_forward(x, params):
    """Pure-JAX reference of the PyTorch forward (eval-mode BN)."""
    x2d = jnp.reshape(x, (-1, IN_FEATURES)).astype(jnp.float32)
    h = x2d @ params["w1"] + params["b1"]
    h = (h - params["running_mean"]) / jnp.sqrt(params["running_var"] + EPS)
    h = h * params["gamma"] + params["beta"]
    h = jnp.maximum(h, 0.0)
    return h @ params["w2"] + params["b2"]


if __name__ == "__main__":
    key = jax.random.PRNGKey(0)
    kx, kp = jax.random.split(key)

    # Encoded-image input: (batch, cnn_output_depth, 3, 3, 3) -> 27*15 = 405 per row.
    x = jax.random.normal(kx, (4, CNN_OUTPUT_DEPTH, 3, 3, 3), jnp.float32)
    params = init_params(kp)

    out = encoded_image_to_hidden(x, params)
    out = jax.block_until_ready(out)

    ref = reference_forward(x, params)
    assert out.shape == (4, HIDDEN_SIZE), out.shape
    assert jnp.allclose(out, ref, atol=1e-4, rtol=1e-4), float(jnp.max(jnp.abs(out - ref)))

    print("KERNEL_OK")
</pallas_src>

<mosaic_0001>
module attributes {stable_mosaic.version = 11 : i64} {
  func.func @_fused_mlp_kernel(%arg0: i32, %arg1: memref<4x405xf32, #tpu.memory_space<vmem>>, %arg2: memref<405x128xf32, #tpu.memory_space<vmem>>, %arg3: memref<1x128xf32, #tpu.memory_space<vmem>>, %arg4: memref<128x10xf32, #tpu.memory_space<vmem>>, %arg5: memref<1x10xf32, #tpu.memory_space<vmem>>, %arg6: memref<4x10xf32, #tpu.memory_space<vmem>>) attributes {dimension_semantics = [#tpu.dimension_semantics<parallel>], iteration_bounds = array<i64: 1>, scalar_prefetch = 0 : i64, scratch_operands = 0 : i64, tpu.core_type = #tpu.core_type<tc>, window_params = [{transform_indices = @transform_0, window_bounds = array<i64: 4, 405>}, {pipeline_mode = #tpu.pipeline_mode<synchronous>, transform_indices = @transform_1, window_bounds = array<i64: 405, 128>}, {pipeline_mode = #tpu.pipeline_mode<synchronous>, transform_indices = @transform_2, window_bounds = array<i64: 1, 128>}, {pipeline_mode = #tpu.pipeline_mode<synchronous>, transform_indices = @transform_3, window_bounds = array<i64: 128, 10>}, {pipeline_mode = #tpu.pipeline_mode<synchronous>, transform_indices = @transform_4, window_bounds = array<i64: 1, 10>}, {transform_indices = @transform_5, window_bounds = array<i64: 4, 10>}]} {
    %c0 = arith.constant 0 : index
    %c0_0 = arith.constant 0 : index
    %0 = vector.load %arg1[%c0, %c0_0] : memref<4x405xf32, #tpu.memory_space<vmem>>, vector<4x405xf32>
    %c0_1 = arith.constant 0 : index
    %c0_2 = arith.constant 0 : index
    %1 = vector.load %arg2[%c0_1, %c0_2] : memref<405x128xf32, #tpu.memory_space<vmem>>, vector<405x128xf32>
    %cst = arith.constant dense<0.000000e+00> : vector<4x128xf32>
    %2 = tpu.matmul %0, %1, %cst {dimension_numbers = #tpu.dot_dimension_numbers<[1], [0], [0], [1], [0, 0, 1, 1], [], []>} : vector<4x405xf32>, vector<405x128xf32>, vector<4x128xf32> -> vector<4x128xf32>
    %c0_3 = arith.constant 0 : index
    %c0_4 = arith.constant 0 : index
    %3 = vector.load %arg3[%c0_3, %c0_4] : memref<1x128xf32, #tpu.memory_space<vmem>>, vector<1x128xf32>
    %4 = vector.broadcast %3 : vector<1x128xf32> to vector<4x128xf32>
    %5 = arith.addf %2, %4 : vector<4x128xf32>
    %cst_5 = arith.constant 0.000000e+00 : f32
    %6 = vector.broadcast %cst_5 : f32 to vector<4x128xf32>
    %7 = arith.maximumf %5, %6 : vector<4x128xf32>
    %c0_6 = arith.constant 0 : index
    %c0_7 = arith.constant 0 : index
    %8 = vector.load %arg4[%c0_6, %c0_7] : memref<128x10xf32, #tpu.memory_space<vmem>>, vector<128x10xf32>
    %cst_8 = arith.constant dense<0.000000e+00> : vector<4x10xf32>
    %9 = tpu.matmul %7, %8, %cst_8 {dimension_numbers = #tpu.dot_dimension_numbers<[1], [0], [0], [1], [0, 0, 1, 1], [], []>} : vector<4x128xf32>, vector<128x10xf32>, vector<4x10xf32> -> vector<4x10xf32>
    %c0_9 = arith.constant 0 : index
    %c0_10 = arith.constant 0 : index
    %10 = vector.load %arg5[%c0_9, %c0_10] : memref<1x10xf32, #tpu.memory_space<vmem>>, vector<1x10xf32>
    %11 = vector.broadcast %10 : vector<1x10xf32> to vector<4x10xf32>
    %12 = arith.addf %9, %11 : vector<4x10xf32>
    %c0_11 = arith.constant 0 : index
    %c0_12 = arith.constant 0 : index
    %13 = vector.load %arg6[%c0_11, %c0_12] : memref<4x10xf32, #tpu.memory_space<vmem>>, vector<4x10xf32>
    tpu.vector_store %arg6[%c0_11, %c0_12], %12 {strides = array<i32>} : memref<4x10xf32, #tpu.memory_space<vmem>>, vector<4x10xf32>,
    return
  }
  func.func @transform_0(%arg0: i32) -> (i32, i32) {
    %c0_i32 = arith.constant 0 : i32
    %c0_i32_0 = arith.constant 0 : i32
    return %arg0, %c0_i32 : i32, i32
  }
  func.func @transform_1(%arg0: i32) -> (i32, i32) {
    %c0_i32 = arith.constant 0 : i32
    %c0_i32_0 = arith.constant 0 : i32
    %c0_i32_1 = arith.constant 0 : i32
    return %c0_i32, %c0_i32_0 : i32, i32
  }
  func.func @transform_2(%arg0: i32) -> (i32, i32) {
    %c0_i32 = arith.constant 0 : i32
    %c0_i32_0 = arith.constant 0 : i32
    %c0_i32_1 = arith.constant 0 : i32
    return %c0_i32, %c0_i32_0 : i32, i32
  }
  func.func @transform_3(%arg0: i32) -> (i32, i32) {
    %c0_i32 = arith.constant 0 : i32
    %c0_i32_0 = arith.constant 0 : i32
    %c0_i32_1 = arith.constant 0 : i32
    return %c0_i32, %c0_i32_0 : i32, i32
  }
  func.func @transform_4(%arg0: i32) -> (i32, i32) {
    %c0_i32 = arith.constant 0 : i32
    %c0_i32_0 = arith.constant 0 : i32
    %c0_i32_1 = arith.constant 0 : i32
    return %c0_i32, %c0_i32_0 : i32, i32
  }
  func.func @transform_5(%arg0: i32) -> (i32, i32) {
    %c0_i32 = arith.constant 0 : i32
    %c0_i32_0 = arith.constant 0 : i32
    return %arg0, %c0_i32 : i32, i32
  }
}

</mosaic_0001>

<llo_original>
// kernel: tpu_custom_call.1
$region0: #{tpu_custom_call.1}
  #allocation0 [shape = 'u32[]', space=smem, size = 0x4, offset = 0x4, fixed_abs, tag = 'smem constant byte address 0x4 - core index']
  #allocation1 [shape = 'u32[144,128]{1,0:T(1,128)}', space=vmem, size = 0x12000, scoped, tag = 'internal scratch']
  %s0 = inlined_call_operand.vmem [shape: f32[4,405], index: 0, kind: input, shape index: {}]
  %s1 = inlined_call_operand.hbm [shape: f32[405,128], index: 1, kind: input, shape index: {}]
  %s2 = inlined_call_operand.vmem [shape: f32[1,128], index: 2, kind: input, shape index: {}]
  %s3 = inlined_call_operand.vmem [shape: f32[128,10], index: 3, kind: input, shape index: {}]
  %s4 = inlined_call_operand.vmem [shape: f32[1,10], index: 4, kind: input, shape index: {}]
  %s5 = inlined_call_operand.hbm [shape: f32[4,10], index: 5, kind: output, shape index: {}]
  %s6 = sld [smem:[#allocation0]]
  $region34: #{tpu_custom_call.1} parent=0
    _
  %s8 = ssub.s32 1, %s6
  %s9 = scalar_select 0, %s8, %s6
  $region1: #{tpu_custom_call.1} parent=0
    #allocation2 [shape = 'u8[208896]{0}', space=vmem, size = 0x33000, scoped, tag = 'input window, operand 1, single buffered']
    #allocation3 [shape = 's32[1]{0}', space=sflag, size = 0x4, scoped, tag = 'scoped memory for tpu_custom_call.1']
    #allocation4 [shape = 's32[1]{0}', space=sflag, size = 0x4, scoped, tag = 'scoped memory for tpu_custom_call.1']
    #allocation5 [shape = 'u8[2048]{0}', space=vmem, size = 0x800, scoped, tag = 'output window, operand 0, single buffered']
    %10 = vsyncpa [#allocation3], 0
    %11 = vsyncpa [#allocation4], 0
    // Predicated region
    $region2: #{tpu_custom_call.1} parent=1 // pred_check
      _
    $region3: #{tpu_custom_call.1} parent=1 // pred_check_branch
      %13 = sbr.rel (0) target = $region5
    $region4: #{tpu_custom_call.1} parent=1 // pred_region
      _
    $region5: #{tpu_custom_call.1} parent=1 // pred_fallthru
      _
    // Predicated region
    $region6: #{tpu_custom_call.1} parent=1 // pred_check
      _
    $region7: #{tpu_custom_call.1} parent=1 // pred_check_branch
      %15 = sbr.rel (0) target = $region9
    $region8: #{tpu_custom_call.1} parent=1 // pred_region
      %s17 = ssub.s32 6528, 6528
      %18 = vsyncadd [#allocation3], %s17
      %s19 = sshll.u32 [#allocation2], 4
      %s20 = int_to_ptr.vmem [resolvable:$true] %s19
      %25 = dma.hbm_to_vmem [thread:$0]  %s1, 6528, %s20, [#allocation3], 128, 128, 8
    $region9: #{tpu_custom_call.1} parent=1 // pred_fallthru
      _
    // Predicated region
    $region10: #{tpu_custom_call.1} parent=1 // pred_check
      _
    $region11: #{tpu_custom_call.1} parent=1 // pred_check_branch
      %27 = sbr.rel (0) target = $region13
    $region12: #{tpu_custom_call.1} parent=1 // pred_region
      _
    $region13: #{tpu_custom_call.1} parent=1 // pred_fallthru
      _
    // Predicated region
    $region14: #{tpu_custom_call.1} parent=1 // pred_check
      _
    $region15: #{tpu_custom_call.1} parent=1 // pred_check_branch
      %29 = sbr.rel (0) target = $region17
    $region16: #{tpu_custom_call.1} parent=1 // pred_region
      _
    $region17: #{tpu_custom_call.1} parent=1 // pred_fallthru
      _
    // Predicated region
    $region18: #{tpu_custom_call.1} parent=1 // pred_check
      _
    $region19: #{tpu_custom_call.1} parent=1 // pred_check_branch
      %31 = sbr.rel (0) target = $region21
    $region20: #{tpu_custom_call.1} parent=1 // pred_region
      _
    $region21: #{tpu_custom_call.1} parent=1 // pred_fallthru
      _
    // Predicated region
    $region22: #{tpu_custom_call.1} parent=1 // pred_check
      _
    $region23: #{tpu_custom_call.1} parent=1 // pred_check_branch
      %33 = sbr.rel (0) target = $region25
    $region24: #{tpu_custom_call.1} parent=1 // pred_region
      %34 = dma.done [#allocation3], 6528
    $region25: #{tpu_custom_call.1} parent=1 // pred_fallthru
      _
    %v35 = vld [vmem:[%s0] sm:$0xff]
    %v36 = vld [vmem:[%s0 + $0x8] sm:$0xff]
    %v37 = vld [vmem:[#allocation2] sm:$0xff]
    %v38 = vld [vmem:[#allocation2 + $0x8] sm:$0xff]
    %v39 = vld [vmem:[#allocation2 + $0x10] sm:$0xff]
    %v40 = vld [vmem:[#allocation2 + $0x18] sm:$0xff]
    %v41 = vld [vmem:[#allocation2 + $0x20] sm:$0xff]
    %v42 = vld [vmem:[#allocation2 + $0x28] sm:$0xff]
    %v43 = vld [vmem:[#allocation2 + $0x30] sm:$0xff]
    %v44 = vld [vmem:[#allocation2 + $0x38] sm:$0xff]
    %v45 = vld [vmem:[#allocation2 + $0x40] sm:$0xff]
    %v46 = vld [vmem:[#allocation2 + $0x48] sm:$0xff]
    %v47 = vld [vmem:[#allocation2 + $0x50] sm:$0xff]
    %v48 = vld [vmem:[#allocation2 + $0x58] sm:$0xff]
    %v49 = vld [vmem:[#allocation2 + $0x60] sm:$0xff]
    %v50 = vld [vmem:[#allocation2 + $0x68] sm:$0xff]
    %v51 = vld [vmem:[#allocation2 + $0x70] sm:$0xff]
    %v52 = vld [vmem:[#allocation2 + $0x78] sm:$0xff]
    %v53 = vld [vmem:[#allocation2 + $0x80] sm:$0xff]
    %v54 = vld [vmem:[#allocation2 + $0x88] sm:$0xff]
    %v55 = vld [vmem:[#allocation2 + $0x90] sm:$0xff]
    %v56 = vld [vmem:[#allocation2 + $0x98] sm:$0xff]
    %v57 = vld [vmem:[#allocation2 + $0xa0] sm:$0xff]
    %v58 = vld [vmem:[#allocation2 + $0xa8] sm:$0xff]
    %v59 = vld [vmem:[#allocation2 + $0xb0] sm:$0xff]
    %v60 = vld [vmem:[#allocation2 + $0xb8] sm:$0xff]
    %v61 = vld [vmem:[#allocation2 + $0xc0] sm:$0xff]
    %v62 = vld [vmem:[#allocation2 + $0xc8] sm:$0xff]
    %v63 = vld [vmem:[#allocation2 + $0xd0] sm:$0xff]
    %v64 = vld [vmem:[#allocation2 + $0xd8] sm:$0xff]
    %v65 = vld [vmem:[#allocation2 + $0xe0] sm:$0xff]
    %v66 = vld [vmem:[#allocation2 + $0xe8] sm:$0xff]
    %v67 = vld [vmem:[#allocation2 + $0xf0] sm:$0xff]
    %v68 = vld [vmem:[#allocation2 + $0xf8] sm:$0xff]
    %v69 = vld [vmem:[#allocation2 + $0x100] sm:$0xff]
    %v70 = vld [vmem:[#allocation2 + $0x108] sm:$0xff]
    %v71 = vld [vmem:[#allocation2 + $0x110] sm:$0xff]
    %v72 = vld [vmem:[#allocation2 + $0x118] sm:$0xff]
    %v73 = vld [vmem:[#allocation2 + $0x120] sm:$0xff]
    %v74 = vld [vmem:[#allocation2 + $0x128] sm:$0xff]
    %v75 = vld [vmem:[#allocation2 + $0x130] sm:$0xff]
    %v76 = vld [vmem:[#allocation2 + $0x138] sm:$0xff]
    %v77 = vld [vmem:[#allocation2 + $0x140] sm:$0xff]
    %v78 = vld [vmem:[#allocation2 + $0x148] sm:$0xff]
    %v79 = vld [vmem:[#allocation2 + $0x150] sm:$0xff]
    %v80 = vld [vmem:[#allocation2 + $0x158] sm:$0xff]
    %v81 = vld [vmem:[#allocation2 + $0x160] sm:$0xff]
    %v82 = vld [vmem:[#allocation2 + $0x168] sm:$0xff]
    %v83 = vld [vmem:[#allocation2 + $0x170] sm:$0xff]
    %v84 = vld [vmem:[#allocation2 + $0x178] sm:$0xff]
    %v85 = vld [vmem:[#allocation2 + $0x180] sm:$0xff]
    %v86 = vld [vmem:[#allocation2 + $0x188] sm:$0xff]
    %v87 = vld [vmem:[#allocation2 + $0x190] sm:$0x1f]
    %v88 = vld [vmem:[%s2] sm:$0x1]
    %v90 = vlaneseq
    %v91 = vshrl.u32 %v90, 7
    %v92 = vsub.s32 0, %v91
    %v93 = vrot.slane %v88, %v92
    %v97 = vcombine.high %v35, %v35
    %v98 = vcombine.high %v36, %v36
    %vm100 = vcmask 171008
    %v101 = vsel %vm100, %v98, 0
    %vm103 = vcmask 1044480
    %v105 = vsel %vm103, %v87, 0
    %107 = vmatprep.subr.mxu0 0.0
    %108 = vmatpush1.msra.mxu0 %v37
    %109 = vmatprep.subr.mxu0 0.0
    %110 = vmatpush1.msra.mxu0 %v38
    %111 = vmatprep.subr.mxu0 0.0
    %112 = vmatpush1.msra.mxu0 %v39
    %113 = vmatprep.subr.mxu0 0.0
    %114 = vmatpush1.msra.mxu0 %v40
    %115 = vmatprep.subr.mxu0 0.0
    %116 = vmatpush1.msra.mxu0 %v41
    %117 = vmatprep.subr.mxu0 0.0
    %118 = vmatpush1.msra.mxu0 %v42
    %119 = vmatprep.subr.mxu0 0.0
    %120 = vmatpush1.msra.mxu0 %v43
    %121 = vmatprep.subr.mxu0 0.0
    %122 = vmatpush1.msra.mxu0 %v44
    %123 = vmatprep.subr.mxu0 0.0
    %124 = vmatpush1.msra.mxu0 %v45
    %125 = vmatprep.subr.mxu0 0.0
    %126 = vmatpush1.msra.mxu0 %v46
    %127 = vmatprep.subr.mxu0 0.0
    %128 = vmatpush1.msra.mxu0 %v47
    %129 = vmatprep.subr.mxu0 0.0
    %130 = vmatpush1.msra.mxu0 %v48
    %131 = vmatprep.subr.mxu0 0.0
    %132 = vmatpush1.msra.mxu0 %v49
    %133 = vmatprep.subr.mxu0 0.0
    %134 = vmatpush1.msra.mxu0 %v50
    %135 = vmatprep.subr.mxu0 0.0
    %136 = vmatpush1.msra.mxu0 %v51
    %137 = vmatprep.subr.mxu0 0.0
    %138 = vmatpush1.msra.mxu0 %v52
    %139 = vmatprep.subr.mxu0 0.0
    %140 = vmatpush1.msra.mxu0 %v53
    %141 = vmatprep.subr.mxu0 0.0
    %142 = vmatpush1.msra.mxu0 %v54
    %143 = vmatprep.subr.mxu0 0.0
    %144 = vmatpush1.msra.mxu0 %v55
    %145 = vmatprep.subr.mxu0 0.0
    %146 = vmatpush1.msra.mxu0 %v56
    %147 = vmatprep.subr.mxu0 0.0
    %148 = vmatpush1.msra.mxu0 %v57
    %149 = vmatprep.subr.mxu0 0.0
    %150 = vmatpush1.msra.mxu0 %v58
    %151 = vmatprep.subr.mxu0 0.0
    %152 = vmatpush1.msra.mxu0 %v59
    %153 = vmatprep.subr.mxu0 0.0
    %154 = vmatpush1.msra.mxu0 %v60
    %155 = vmatprep.subr.mxu0 0.0
    %156 = vmatpush1.msra.mxu0 %v61
    %157 = vmatprep.subr.mxu0 0.0
    %158 = vmatpush1.msra.mxu0 %v62
    %159 = vmatprep.subr.mxu0 0.0
    %160 = vmatpush1.msra.mxu0 %v63
    %161 = vmatprep.subr.mxu0 0.0
    %162 = vmatpush1.msra.mxu0 %v64
    %163 = vmatprep.subr.mxu0 0.0
    %164 = vmatpush1.msra.mxu0 %v65
    %165 = vmatprep.subr.mxu0 0.0
    %166 = vmatpush1.msra.mxu0 %v66
    %167 = vmatprep.subr.mxu0 0.0
    %168 = vmatpush1.msra.mxu0 %v67
    %169 = vmatprep.subr.mxu0 0.0
    %170 = vmatpush1.msra.mxu0 %v68
    %171 = vmatprep.mubr.f32.mxu0 %v97
    %172 = vmatmul.mubr.f32.gmra.mrb[0].mxu0 %v35
    %v173 = vpop.f32.mrb[0].mxu0
    %v174 = vadd.f32 %v93, %v173
    %v175 = vpop.f32.mrb[0].mxu0
    %176 = vdwg.mxu0
    %177 = vmatprep.subr.mxu0 0.0
    %178 = vmatpush1.msra.mxu0 %v69
    %179 = vmatprep.subr.mxu0 0.0
    %180 = vmatpush1.msra.mxu0 %v70
    %181 = vmatprep.subr.mxu0 0.0
    %182 = vmatpush1.msra.mxu0 %v71
    %183 = vmatprep.subr.mxu0 0.0
    %184 = vmatpush1.msra.mxu0 %v72
    %185 = vmatprep.subr.mxu0 0.0
    %186 = vmatpush1.msra.mxu0 %v73
    %187 = vmatprep.subr.mxu0 0.0
    %188 = vmatpush1.msra.mxu0 %v74
    %189 = vmatprep.subr.mxu0 0.0
    %190 = vmatpush1.msra.mxu0 %v75
    %191 = vmatprep.subr.mxu0 0.0
    %192 = vmatpush1.msra.mxu0 %v76
    %193 = vmatprep.subr.mxu0 0.0
    %194 = vmatpush1.msra.mxu0 %v77
    %195 = vmatprep.subr.mxu0 0.0
    %196 = vmatpush1.msra.mxu0 %v78
    %197 = vmatprep.subr.mxu0 0.0
    %198 = vmatpush1.msra.mxu0 %v79
    %199 = vmatprep.subr.mxu0 0.0
    %200 = vmatpush1.msra.mxu0 %v80
    %201 = vmatprep.subr.mxu0 0.0
    %202 = vmatpush1.msra.mxu0 %v81
    %203 = vmatprep.subr.mxu0 0.0
    %204 = vmatpush1.msra.mxu0 %v82
    %205 = vmatprep.subr.mxu0 0.0
    %206 = vmatpush1.msra.mxu0 %v83
    %207 = vmatprep.subr.mxu0 0.0
    %208 = vmatpush1.msra.mxu0 %v84
    %209 = vmatprep.subr.mxu0 0.0
    %210 = vmatpush1.msra.mxu0 %v85
    %211 = vmatprep.subr.mxu0 0.0
    %212 = vmatpush1.msra.mxu0 %v86
    %213 = vmatprep.subr.mxu0 0.0
    %214 = vmatpush1.msra.mxu0 %v105
    %215 = vmatprep.subr.mxu0 0.0
    %216 = vmatpush1.msra.mxu0 0.0
    %217 = vmatprep.subr.mxu0 0.0
    %218 = vmatpush1.msra.mxu0 0.0
    %219 = vmatprep.subr.mxu0 0.0
    %220 = vmatpush1.msra.mxu0 0.0
    %221 = vmatprep.subr.mxu0 0.0
    %222 = vmatpush1.msra.mxu0 0.0
    %223 = vmatprep.subr.mxu0 0.0
    %224 = vmatpush1.msra.mxu0 0.0
    %225 = vmatprep.subr.mxu0 0.0
    %226 = vmatpush1.msra.mxu0 0.0
    %227 = vmatprep.subr.mxu0 0.0
    %228 = vmatpush1.msra.mxu0 0.0
    %229 = vmatprep.subr.mxu0 0.0
    %230 = vmatpush1.msra.mxu0 0.0
    %231 = vmatprep.subr.mxu0 0.0
    %232 = vmatpush1.msra.mxu0 0.0
    %233 = vmatprep.subr.mxu0 0.0
    %234 = vmatpush1.msra.mxu0 0.0
    %235 = vmatprep.subr.mxu0 0.0
    %236 = vmatpush1.msra.mxu0 0.0
    %237 = vmatprep.subr.mxu0 0.0
    %238 = vmatpush1.msra.mxu0 0.0
    %239 = vmatprep.subr.mxu0 0.0
    %240 = vmatpush1.msra.mxu0 0.0
    %241 = vmatprep.mubr.f32.mxu0 %v101
    %242 = vmatmul.mubr.f32.gmra.mrb[0].mxu0 %v36
    %v243 = vpop.f32.mrb[0].mxu0
    %v244 = vadd.f32 %v174, %v243
    %v245 = vpop.f32.mrb[0].mxu0
    %246 = vdwg.mxu0
    %v247 = vmax.f32 %v244, 0.0
    %v248 = vld [vmem:[%s3] sm:$0xff]
    %v249 = vld [vmem:[%s3 + $0x8] sm:$0xff]
    %v250 = vld [vmem:[%s3 + $0x10] sm:$0xff]
    %v251 = vld [vmem:[%s3 + $0x18] sm:$0xff]
    %v252 = vld [vmem:[%s3 + $0x20] sm:$0xff]
    %v253 = vld [vmem:[%s3 + $0x28] sm:$0xff]
    %v254 = vld [vmem:[%s3 + $0x30] sm:$0xff]
    %v255 = vld [vmem:[%s3 + $0x38] sm:$0xff]
    %v256 = vld [vmem:[%s3 + $0x40] sm:$0xff]
    %v257 = vld [vmem:[%s3 + $0x48] sm:$0xff]
    %v258 = vld [vmem:[%s3 + $0x50] sm:$0xff]
    %v259 = vld [vmem:[%s3 + $0x58] sm:$0xff]
    %v260 = vld [vmem:[%s3 + $0x60] sm:$0xff]
    %v261 = vld [vmem:[%s3 + $0x68] sm:$0xff]
    %v262 = vld [vmem:[%s3 + $0x70] sm:$0xff]
    %v263 = vld [vmem:[%s3 + $0x78] sm:$0xff]
    %v264 = vld [vmem:[%s4] sm:$0x1]
    %v266 = vlaneseq
    %v267 = vshrl.u32 %v266, 7
    %v268 = vsub.s32 0, %v267
    %v269 = vrot.slane %v264, %v268
    %271 = vmatprep.subr.mxu0 0.0
    %272 = vmatpush1.msra.mxu0 %v248
    %273 = vmatprep.subr.mxu0 0.0
    %274 = vmatpush1.msra.mxu0 %v249
    %275 = vmatprep.subr.mxu0 0.0
    %276 = vmatpush1.msra.mxu0 %v250
    %277 = vmatprep.subr.mxu0 0.0
    %278 = vmatpush1.msra.mxu0 %v251
    %279 = vmatprep.subr.mxu0 0.0
    %280 = vmatpush1.msra.mxu0 %v252
    %281 = vmatprep.subr.mxu0 0.0
    %282 = vmatpush1.msra.mxu0 %v253
    %283 = vmatprep.subr.mxu0 0.0
    %284 = vmatpush1.msra.mxu0 %v254
    %285 = vmatprep.subr.mxu0 0.0
    %286 = vmatpush1.msra.mxu0 %v255
    %287 = vmatprep.subr.mxu0 0.0
    %288 = vmatpush1.msra.mxu0 %v256
    %289 = vmatprep.subr.mxu0 0.0
    %290 = vmatpush1.msra.mxu0 %v257
    %291 = vmatprep.subr.mxu0 0.0
    %292 = vmatpush1.msra.mxu0 %v258
    %293 = vmatprep.subr.mxu0 0.0
    %294 = vmatpush1.msra.mxu0 %v259
    %295 = vmatprep.subr.mxu0 0.0
    %296 = vmatpush1.msra.mxu0 %v260
    %297 = vmatprep.subr.mxu0 0.0
    %298 = vmatpush1.msra.mxu0 %v261
    %299 = vmatprep.subr.mxu0 0.0
    %300 = vmatpush1.msra.mxu0 %v262
    %301 = vmatprep.subr.mxu0 0.0
    %302 = vmatpush1.msra.mxu0 %v263
    %303 = vmatprep.subr.mxu0 0.0
    %304 = vmatpush1.msra.mxu0 0.0
    %305 = vmatprep.subr.mxu0 0.0
    %306 = vmatpush1.msra.mxu0 0.0
    %307 = vmatprep.subr.mxu0 0.0
    %308 = vmatpush1.msra.mxu0 0.0
    %309 = vmatprep.subr.mxu0 0.0
    %310 = vmatpush1.msra.mxu0 0.0
    %311 = vmatprep.subr.mxu0 0.0
    %312 = vmatpush1.msra.mxu0 0.0
    %313 = vmatprep.subr.mxu0 0.0
    %314 = vmatpush1.msra.mxu0 0.0
    %315 = vmatprep.subr.mxu0 0.0
    %316 = vmatpush1.msra.mxu0 0.0
    %317 = vmatprep.subr.mxu0 0.0
    %318 = vmatpush1.msra.mxu0 0.0
    %319 = vmatprep.subr.mxu0 0.0
    %320 = vmatpush1.msra.mxu0 0.0
    %321 = vmatprep.subr.mxu0 0.0
    %322 = vmatpush1.msra.mxu0 0.0
    %323 = vmatprep.subr.mxu0 0.0
    %324 = vmatpush1.msra.mxu0 0.0
    %325 = vmatprep.subr.mxu0 0.0
    %326 = vmatpush1.msra.mxu0 0.0
    %327 = vmatprep.subr.mxu0 0.0
    %328 = vmatpush1.msra.mxu0 0.0
    %329 = vmatprep.subr.mxu0 0.0
    %330 = vmatpush1.msra.mxu0 0.0
    %331 = vmatprep.subr.mxu0 0.0
    %332 = vmatpush1.msra.mxu0 0.0
    %333 = vmatprep.subr.mxu0 0.0
    %334 = vmatpush1.msra.mxu0 0.0
    %335 = vmatprep.mubr.f32.mxu0 0.0
    %336 = vmatmul.mubr.f32.gmra.mrb[0].mxu0 %v247
    %v337 = vpop.f32.mrb[0].mxu0
    %v338 = vadd.f32 %v269, %v337
    %v339 = vpop.f32.mrb[0].mxu0
    %340 = vdwg.mxu0
    %vm341 = vcmask 76800
    %342 = vst.msk [vmem:[#allocation5] sm:$0xf] %vm341, %v338
    // Predicated region
    $region26: #{tpu_custom_call.1} parent=1 // pred_check
      _
    $region27: #{tpu_custom_call.1} parent=1 // pred_check_branch
      %344 = sbr.rel (0) target = $region29
    $region28: #{tpu_custom_call.1} parent=1 // pred_region
      %s346 = ssub.s32 64, 64
      %347 = vsyncadd [#allocation4], %s346
      %s349 = sshll.u32 [#allocation5], 4
      %s350 = int_to_ptr.vmem [resolvable:$true] %s349
      %352 = dma.vmem_to_hbm [thread:$0]  %s350, 64, %s5, [#allocation4]
    $region29: #{tpu_custom_call.1} parent=1 // pred_fallthru
      _
    // Predicated region
    $region30: #{tpu_custom_call.1} parent=1 // pred_check
      _
    $region31: #{tpu_custom_call.1} parent=1 // pred_check_branch
      %354 = sbr.rel (0) target = $region33
    $region32: #{tpu_custom_call.1} parent=1 // pred_region
      %355 = dma.done [#allocation4], 64
    $region33: #{tpu_custom_call.1} parent=1 // pred_fallthru
      _
    %356 = vsyncpa [#allocation3], 1
    %357 = vsyncpa [#allocation4], 1

</llo_original>
